<compile_context>
chip_gen: v7x
topology: tpu7x:2x2x1
jax: 0.10.0
libtpu: 0.0.40
codegen_flags: <defaults>
</compile_context>

<pallas_src>
import functools

import numpy as np
import jax
import jax.numpy as jnp
from jax import lax
from jax.experimental import pallas as pl
from jax.experimental.pallas import tpu as pltpu

K = 9        # ConvTranspose1d kernel size
SCALE = 4    # Upsample scale factor
N_SEQ = 4    # 'seq' branch output channels (sigmoid/BN channels)
N_OUT = 6    # total output channels (4 + 1 + 1)

_DENSE_M_BYTES_MAX = 12 * 1024 * 1024   # bf16 bytes of fused M before banding
_BAND_M_BYTES_MAX = 4 * 1024 * 1024     # bf16 bytes per M column band


# ---------------------------------------------------------------------------
# Host-side folding of the linear pipeline
# ---------------------------------------------------------------------------
def _linear_upsample_matrix(L, scale):
    """(L, L*scale) matrix reproducing nn.Upsample(mode='linear', align_corners=False)."""
    L_up = L * scale
    j = np.arange(L_up)
    src = np.maximum((j + 0.5) / scale - 0.5, 0.0)
    x0 = np.floor(src).astype(np.int64)
    lam = src - x0
    x1 = np.minimum(x0 + 1, L - 1)
    U = np.zeros((L, L_up), dtype=np.float32)
    np.add.at(U, (x0, j), 1.0 - lam)
    np.add.at(U, (x1, j), lam)
    return U


def _fused_affine(params, C5, L):
    """Fold upsample -> ConvTranspose1d -> bias -> BN(eval) into (M_bf16, bias_row_f32).

    Output layout is per-channel lane-padded: channel c occupies lanes
    [c*L_pad, c*L_pad + L_out) of the (1, 6*L_pad) row, L_pad a multiple of 128.
    """
    L_up = L * SCALE
    L_out = L_up + K - 1
    L_pad = 128 * ((L_out + 127) // 128)

    U = _linear_upsample_matrix(L, SCALE)                       # (L, L_up)
    U_pad = np.pad(U, ((0, 0), (K - 1, K - 1)))                 # (L, L_pad_conv)
    # S[l, k, t] = U_pad[l, t + k]  (shifted stacks for the stride-1 conv)
    S = np.stack([U_pad[:, k:k + L_out] for k in range(K)], axis=1)   # (L, K, L_out)

    w_all = np.concatenate([np.asarray(params['w_seq']),
                            np.asarray(params['w_open']),
                            np.asarray(params['w_loop'])], axis=1)    # (C5, 6, K)
    b_all = np.concatenate([np.asarray(params['b_seq']),
                            np.asarray(params['b_open']),
                            np.asarray(params['b_loop'])])            # (6,)
    wf = w_all[:, :, ::-1]                                            # flipped kernel

    eps = 1e-5
    bn_scale = np.asarray(params['bn_gamma']) / np.sqrt(np.asarray(params['bn_var']) + eps)
    bn_shift = np.asarray(params['bn_beta']) - np.asarray(params['bn_mean']) * bn_scale
    scale_all = np.concatenate([bn_scale, np.ones((2,), np.float32)])   # (6,)
    shift_all = np.concatenate([bn_shift, np.zeros((2,), np.float32)])  # (6,)

    # M[c5, l, c, t] = scale[c] * sum_k wf[c5, c, k] * U_pad[l, t + k]
    M = np.einsum('cok,lkt->clot', wf, S) * scale_all[None, None, :, None]
    M_pad = np.zeros((C5, L, N_OUT, L_pad), np.float32)
    M_pad[..., :L_out] = M
    M2 = np.ascontiguousarray(M_pad.reshape(C5 * L, N_OUT * L_pad))

    bias = (b_all * scale_all + shift_all).astype(np.float32)           # (6,)
    b_pad = np.zeros((N_OUT, L_pad), np.float32)
    b_pad[:, :L_out] = bias[:, None]
    bias_row = np.ascontiguousarray(b_pad.reshape(1, N_OUT * L_pad))

    return (jnp.asarray(M2, dtype=jnp.bfloat16),
            jnp.asarray(bias_row, dtype=jnp.float32),
            L_out, L_pad)


# ---------------------------------------------------------------------------
# Kernels
# ---------------------------------------------------------------------------
def _dense_kernel(n_sig, x_ref, m_ref, b_ref, out_ref):
    # x_ref:   (Bn, C5*L) bf16
    # m_ref:   (C5*L, 6*L_pad) bf16   fused affine map (grid-invariant)
    # b_ref:   (1, 6*L_pad) f32       fused bias row   (grid-invariant)
    # out_ref: (Bn, 6*L_pad) f32      lane-dense output slab
    y = jnp.dot(x_ref[...], m_ref[...], preferred_element_type=jnp.float32)
    y = y + b_ref[...]
    # Static, 128-aligned split: lanes [0, n_sig) are the BN+Sigmoid channels,
    # lanes [n_sig, end) are the ReLU channels.  Sigmoid via EUP exp + approx
    # reciprocal (no divide, no select).
    e = jnp.exp(-y[:, :n_sig])
    out_ref[:, :n_sig] = pl.reciprocal(1.0 + e, approx=True).astype(out_ref.dtype)
    out_ref[:, n_sig:] = jnp.maximum(y[:, n_sig:], 0.0).astype(out_ref.dtype)


def _banded_kernel(n_sig_blocks, x_ref, m_ref, b_ref, out_ref):
    # Column-banded variant: each grid step (n, j) computes one 128-aligned
    # column band of the output; band j is entirely sigmoid or entirely relu.
    y = jnp.dot(x_ref[...], m_ref[...], preferred_element_type=jnp.float32)
    y = y + b_ref[...]
    j = pl.program_id(1)

    @pl.when(j < n_sig_blocks)
    def _():
        e = jnp.exp(-y)
        out_ref[...] = pl.reciprocal(1.0 + e, approx=True).astype(out_ref.dtype)

    @pl.when(j >= n_sig_blocks)
    def _():
        out_ref[...] = jnp.maximum(y, 0.0).astype(out_ref.dtype)


# ---------------------------------------------------------------------------
# Host-side sizing helpers
# ---------------------------------------------------------------------------
def _max_block_rows():
    # 256-row MXU on v6e/v7x; 128-row passes on older chips.
    try:
        kind = jax.devices()[0].device_kind.lower()
    except Exception:
        return 256
    if any(t in kind for t in ("v2", "v3", "v4", "v5")):
        return 128
    return 256


def _pick_block_n(N, max_block):
    """Sublane-aligned row block: minimal zero pad, >=2 row blocks when possible."""
    if N <= 8:
        return 8
    target_blocks = max(2, pl.cdiv(N, max_block))
    bn = 8 * pl.cdiv(N, 8 * target_blocks)
    return int(max(8, min(bn, max_block)))


def _pick_co_block(CL, L_pad):
    """Largest multiple-of-128 divisor of L_pad whose M band fits the band budget."""
    d = L_pad // 128
    for m in range(d, 0, -1):
        if d % m == 0:
            co = 128 * m
            if CL * co * 2 <= _BAND_M_BYTES_MAX:
                return co
    return 128


def _vmem_limit(block_n, CL, co_block, m_buffers):
    need = (2 * block_n * CL * 2             # x tile, bf16, double-buffered
            + m_buffers * CL * co_block * 2  # fused map band(s), bf16
            + m_buffers * co_block * 4       # bias row, f32
            + 2 * block_n * co_block * 4)    # output tile, f32, double-buffered
    limit = 2 * need + (2 << 20)             # generous headroom for internal scratch
    return int(min(64 << 20, max(16 << 20, limit)))


# ---------------------------------------------------------------------------
# Wrapper
# ---------------------------------------------------------------------------
def decoder1_pallas(x, params, block_n=None, force_banded=None):
    N, C5, L = x.shape
    M2, bias_row, L_out, L_pad = _fused_affine(params, C5, L)

    CL = C5 * L
    CO = N_OUT * L_pad
    SIG = N_SEQ * L_pad

    if block_n is None:
        block_n = _pick_block_n(N, _max_block_rows())
    n_row = pl.cdiv(N, block_n)
    N_pad = n_row * block_n

    x_flat = x.reshape(N, CL).astype(jnp.bfloat16)
    if N_pad != N:
        x_flat = jnp.pad(x_flat, ((0, N_pad - N), (0, 0)))

    m_bytes = CL * CO * 2
    banded = (m_bytes > _DENSE_M_BYTES_MAX) if force_banded is None else bool(force_banded)

    if not banded:
        def run(single_buffer):
            const_kw = dict(pipeline_mode=pl.Buffered(1)) if single_buffer else {}
            m_buf = 1 if single_buffer else 2
            return pl.pallas_call(
                functools.partial(_dense_kernel, SIG),
                out_shape=jax.ShapeDtypeStruct((N_pad, CO), jnp.float32),
                grid=(n_row,),
                in_specs=[
                    pl.BlockSpec((block_n, CL), lambda n: (n, 0)),          # x rows
                    pl.BlockSpec((CL, CO), lambda n: (0, 0), **const_kw),   # fused map
                    pl.BlockSpec((1, CO), lambda n: (0, 0), **const_kw),    # bias row
                ],
                out_specs=pl.BlockSpec((block_n, CO), lambda n: (n, 0)),
                compiler_params=pltpu.CompilerParams(
                    dimension_semantics=("parallel",),
                    vmem_limit_bytes=_vmem_limit(block_n, CL, CO, m_buf)),
            )(x_flat, M2, bias_row)

        try:
            out_flat = run(True)
            jax.block_until_ready(out_flat)   # surface any Buffered(1) issue here
        except Exception:
            # Fallback: default double-buffered grid-invariant operands.
            out_flat = run(False)
    else:
        co_block = _pick_co_block(CL, L_pad)
        n_col = CO // co_block
        n_sig_blocks = SIG // co_block
        out_flat = pl.pallas_call(
            functools.partial(_banded_kernel, n_sig_blocks),
            out_shape=jax.ShapeDtypeStruct((N_pad, CO), jnp.float32),
            grid=(n_row, n_col),
            in_specs=[
                pl.BlockSpec((block_n, CL), lambda n, j: (n, 0)),
                pl.BlockSpec((CL, co_block), lambda n, j: (0, j)),
                pl.BlockSpec((1, co_block), lambda n, j: (0, j)),
            ],
            out_specs=pl.BlockSpec((block_n, co_block), lambda n, j: (n, j)),
            compiler_params=pltpu.CompilerParams(
                dimension_semantics=("parallel", "parallel"),
                vmem_limit_bytes=_vmem_limit(block_n, CL, co_block, 2)),
        )(x_flat, M2, bias_row)

    out = out_flat[:N].reshape(N, N_OUT, L_pad)[:, :, :L_out]
    return out.astype(x.dtype)


# ---------------------------------------------------------------------------
# Pure-JAX reference (lax conv) for correctness checking
# ---------------------------------------------------------------------------
def decoder1_ref(x, params):
    N, C5, L = x.shape
    U = jnp.asarray(_linear_upsample_matrix(L, SCALE))
    x_up = jnp.einsum('ncl,lm->ncm', x, U)

    def convt(xu, w, b):
        rhs = jnp.transpose(w[:, :, ::-1], (1, 0, 2))                # (C_out, C_in, K)
        y = lax.conv_general_dilated(xu, rhs, window_strides=(1,),
                                     padding=[(K - 1, K - 1)],
                                     dimension_numbers=('NCH', 'OIH', 'NCH'))
        return y + b[None, :, None]

    eps = 1e-5
    scale = params['bn_gamma'] / jnp.sqrt(params['bn_var'] + eps)
    shift = params['bn_beta'] - params['bn_mean'] * scale
    seq = convt(x_up, params['w_seq'], params['b_seq'])
    seq = jax.nn.sigmoid(seq * scale[None, :, None] + shift[None, :, None])
    opn = jax.nn.relu(convt(x_up, params['w_open'], params['b_open']))
    lop = jax.nn.relu(convt(x_up, params['w_loop'], params['b_loop']))
    return jnp.concatenate([seq, opn, lop], axis=1)


if __name__ == "__main__":
    N, C5, L = 2, 4, 16                     # batch, channel5, input length
    key = jax.random.PRNGKey(0)
    ks = jax.random.split(key, 11)
    x = jax.random.normal(ks[0], (N, C5, L), jnp.float32)
    params = dict(
        w_seq=0.1 * jax.random.normal(ks[1], (C5, 4, K), jnp.float32),
        b_seq=0.1 * jax.random.normal(ks[2], (4,), jnp.float32),
        w_open=0.1 * jax.random.normal(ks[3], (C5, 1, K), jnp.float32),
        b_open=0.1 * jax.random.normal(ks[4], (1,), jnp.float32),
        w_loop=0.1 * jax.random.normal(ks[5], (C5, 1, K), jnp.float32),
        b_loop=0.1 * jax.random.normal(ks[6], (1,), jnp.float32),
        bn_gamma=1.0 + 0.1 * jax.random.normal(ks[7], (4,), jnp.float32),
        bn_beta=0.1 * jax.random.normal(ks[8], (4,), jnp.float32),
        bn_mean=0.1 * jax.random.normal(ks[9], (4,), jnp.float32),
        bn_var=1.0 + 0.1 * jnp.abs(jax.random.normal(ks[10], (4,), jnp.float32)),
    )

    ref = jax.block_until_ready(decoder1_ref(x, params))

    # Dense (single fused matmul) path — the default at small L.
    out = jax.block_until_ready(decoder1_pallas(x, params))
    assert out.shape == (N, 6, SCALE * L + K - 1), out.shape
    # bf16 matmul operands + approximate-reciprocal sigmoid -> loosened tolerance.
    np.testing.assert_allclose(np.asarray(out), np.asarray(ref), rtol=2e-2, atol=2e-2)

    # Banded (column-split) path — used automatically for large L / VMEM limits;
    # exercised here explicitly so both code paths are verified on-device.
    out_b = jax.block_until_ready(decoder1_pallas(x, params, force_banded=True))
    np.testing.assert_allclose(np.asarray(out_b), np.asarray(ref), rtol=2e-2, atol=2e-2)

    print("KERNEL_OK")
</pallas_src>

<mosaic_0001>
module attributes {stable_mosaic.version = 11 : i64} {
  func.func @_dense_kernel(%arg0: i32, %arg1: memref<8x64xbf16, #tpu.memory_space<vmem>>, %arg2: memref<64x768xbf16, #tpu.memory_space<vmem>>, %arg3: memref<1x768xf32, #tpu.memory_space<vmem>>, %arg4: memref<8x768xf32, #tpu.memory_space<vmem>>) attributes {dimension_semantics = [#tpu.dimension_semantics<parallel>], iteration_bounds = array<i64: 1>, scalar_prefetch = 0 : i64, scratch_operands = 0 : i64, tpu.core_type = #tpu.core_type<tc>, window_params = [{transform_indices = @transform_0, window_bounds = array<i64: 8, 64>}, {pipeline_mode = #tpu.pipeline_mode<synchronous>, transform_indices = @transform_1, window_bounds = array<i64: 64, 768>}, {pipeline_mode = #tpu.pipeline_mode<synchronous>, transform_indices = @transform_2, window_bounds = array<i64: 1, 768>}, {transform_indices = @transform_3, window_bounds = array<i64: 8, 768>}]} {
    %c0 = arith.constant 0 : index
    %c0_0 = arith.constant 0 : index
    %0 = vector.load %arg1[%c0, %c0_0] : memref<8x64xbf16, #tpu.memory_space<vmem>>, vector<8x64xbf16>
    %c0_1 = arith.constant 0 : index
    %c0_2 = arith.constant 0 : index
    %1 = vector.load %arg2[%c0_1, %c0_2] : memref<64x768xbf16, #tpu.memory_space<vmem>>, vector<64x768xbf16>
    %cst = arith.constant dense<0.000000e+00> : vector<8x768xf32>
    %2 = tpu.matmul %0, %1, %cst {dimension_numbers = #tpu.dot_dimension_numbers<[1], [0], [0], [1], [0, 0, 1, 1], [], []>} : vector<8x64xbf16>, vector<64x768xbf16>, vector<8x768xf32> -> vector<8x768xf32>
    %c0_3 = arith.constant 0 : index
    %c0_4 = arith.constant 0 : index
    %3 = vector.load %arg3[%c0_3, %c0_4] : memref<1x768xf32, #tpu.memory_space<vmem>>, vector<1x768xf32>
    %4 = vector.broadcast %3 : vector<1x768xf32> to vector<8x768xf32>
    %5 = arith.addf %2, %4 : vector<8x768xf32>
    %6 = vector.extract_strided_slice %5 {offsets = [0, 0], sizes = [8, 512], strides = [1, 1]} : vector<8x768xf32> to vector<8x512xf32>
    %cst_5 = arith.constant 0.000000e+00 : f32
    %7 = vector.broadcast %cst_5 : f32 to vector<8x512xf32>
    %8 = arith.subf %7, %6 : vector<8x512xf32>
    %9 = math.exp %8 : vector<8x512xf32>
    %cst_6 = arith.constant 1.000000e+00 : f32
    %10 = vector.broadcast %cst_6 : f32 to vector<8x512xf32>
    %11 = arith.addf %10, %9 : vector<8x512xf32>
    %12 = tpu.reciprocal %11 {approx = true} : vector<8x512xf32> -> vector<8x512xf32>
    %c0_7 = arith.constant 0 : index
    %c0_8 = arith.constant 0 : index
    %13 = vector.load %arg4[%c0_7, %c0_8] : memref<8x768xf32, #tpu.memory_space<vmem>>, vector<8x512xf32>
    tpu.vector_store %arg4[%c0_7, %c0_8], %12 {strides = array<i32>} : memref<8x768xf32, #tpu.memory_space<vmem>>, vector<8x512xf32>,
    %14 = vector.extract_strided_slice %5 {offsets = [0, 512], sizes = [8, 256], strides = [1, 1]} : vector<8x768xf32> to vector<8x256xf32>
    %cst_9 = arith.constant 0.000000e+00 : f32
    %15 = vector.broadcast %cst_9 : f32 to vector<8x256xf32>
    %16 = arith.maximumf %14, %15 : vector<8x256xf32>
    %c0_10 = arith.constant 0 : index
    %c512 = arith.constant 512 : index
    %17 = vector.load %arg4[%c0_10, %c512] : memref<8x768xf32, #tpu.memory_space<vmem>>, vector<8x256xf32>
    tpu.vector_store %arg4[%c0_10, %c512], %16 {strides = array<i32>} : memref<8x768xf32, #tpu.memory_space<vmem>>, vector<8x256xf32>,
    return
  }
  func.func @transform_0(%arg0: i32) -> (i32, i32) {
    %c0_i32 = arith.constant 0 : i32
    %c0_i32_0 = arith.constant 0 : i32
    return %arg0, %c0_i32 : i32, i32
  }
  func.func @transform_1(%arg0: i32) -> (i32, i32) {
    %c0_i32 = arith.constant 0 : i32
    %c0_i32_0 = arith.constant 0 : i32
    %c0_i32_1 = arith.constant 0 : i32
    return %c0_i32, %c0_i32_0 : i32, i32
  }
  func.func @transform_2(%arg0: i32) -> (i32, i32) {
    %c0_i32 = arith.constant 0 : i32
    %c0_i32_0 = arith.constant 0 : i32
    %c0_i32_1 = arith.constant 0 : i32
    return %c0_i32, %c0_i32_0 : i32, i32
  }
  func.func @transform_3(%arg0: i32) -> (i32, i32) {
    %c0_i32 = arith.constant 0 : i32
    %c0_i32_0 = arith.constant 0 : i32
    return %arg0, %c0_i32 : i32, i32
  }
}

module attributes {stable_mosaic.version = 11 : i64} {
  func.func @_dense_kernel(%arg0: i32, %arg1: memref<8x64xbf16, #tpu.memory_space<vmem>>, %arg2: memref<64x768xbf16, #tpu.memory_space<vmem>>, %arg3: memref<1x768xf32, #tpu.memory_space<vmem>>, %arg4: memref<8x768xf32, #tpu.memory_space<vmem>>) attributes {dimension_semantics = [#tpu.dimension_semantics<parallel>], iteration_bounds = array<i64: 1>, scalar_prefetch = 0 : i64, scratch_operands = 0 : i64, tpu.core_type = #tpu.core_type<tc>, window_params = [{transform_indices = @transform_0, window_bounds = array<i64: 8, 64>}, {pipeline_mode = #tpu.pipeline_mode<synchronous>, transform_indices = @transform_1, window_bounds = array<i64: 64, 768>}, {pipeline_mode = #tpu.pipeline_mode<synchronous>, transform_indices = @transform_2, window_bounds = array<i64: 1, 768>}, {transform_indices = @transform_3, window_bounds = array<i64: 8, 768>}]} {
    %c0 = arith.constant 0 : index
    %c0_0 = arith.constant 0 : index
    %0 = vector.load %arg1[%c0, %c0_0] : memref<8x64xbf16, #tpu.memory_space<vmem>>, vector<8x64xbf16>
    %c0_1 = arith.constant 0 : index
    %c0_2 = arith.constant 0 : index
    %1 = vector.load %arg2[%c0_1, %c0_2] : memref<64x768xbf16, #tpu.memory_space<vmem>>, vector<64x768xbf16>
    %cst = arith.constant dense<0.000000e+00> : vector<8x768xf32>
    %2 = tpu.matmul %0, %1, %cst {dimension_numbers = #tpu.dot_dimension_numbers<[1], [0], [0], [1], [0, 0, 1, 1], [], []>} : vector<8x64xbf16>, vector<64x768xbf16>, vector<8x768xf32> -> vector<8x768xf32>
    %c0_3 = arith.constant 0 : index
    %c0_4 = arith.constant 0 : index
    %3 = vector.load %arg3[%c0_3, %c0_4] : memref<1x768xf32, #tpu.memory_space<vmem>>, vector<1x768xf32>
    %4 = vector.broadcast %3 : vector<1x768xf32> to vector<8x768xf32>
    %5 = arith.addf %2, %4 : vector<8x768xf32>
    %6 = vector.extract_strided_slice %5 {offsets = [0, 0], sizes = [8, 512], strides = [1, 1]} : vector<8x768xf32> to vector<8x512xf32>
    %cst_5 = arith.constant 0.000000e+00 : f32
    %7 = vector.broadcast %cst_5 : f32 to vector<8x512xf32>
    %8 = arith.subf %7, %6 : vector<8x512xf32>
    %9 = math.exp %8 : vector<8x512xf32>
    %cst_6 = arith.constant 1.000000e+00 : f32
    %10 = vector.broadcast %cst_6 : f32 to vector<8x512xf32>
    %11 = arith.addf %10, %9 : vector<8x512xf32>
    %12 = tpu.reciprocal %11 {approx = true} : vector<8x512xf32> -> vector<8x512xf32>
    %c0_7 = arith.constant 0 : index
    %c0_8 = arith.constant 0 : index
    %13 = vector.load %arg4[%c0_7, %c0_8] : memref<8x768xf32, #tpu.memory_space<vmem>>, vector<8x512xf32>
    tpu.vector_store %arg4[%c0_7, %c0_8], %12 {strides = array<i32>} : memref<8x768xf32, #tpu.memory_space<vmem>>, vector<8x512xf32>,
    %14 = vector.extract_strided_slice %5 {offsets = [0, 512], sizes = [8, 256], strides = [1, 1]} : vector<8x768xf32> to vector<8x256xf32>
    %cst_9 = arith.constant 0.000000e+00 : f32
    %15 = vector.broadcast %cst_9 : f32 to vector<8x256xf32>
    %16 = arith.maximumf %14, %15 : vector<8x256xf32>
    %c0_10 = arith.constant 0 : index
    %c512 = arith.constant 512 : index
    %17 = vector.load %arg4[%c0_10, %c512] : memref<8x768xf32, #tpu.memory_space<vmem>>, vector<8x256xf32>
    tpu.vector_store %arg4[%c0_10, %c512], %16 {strides = array<i32>} : memref<8x768xf32, #tpu.memory_space<vmem>>, vector<8x256xf32>,
    return
  }
  func.func @transform_0(%arg0: i32) -> (i32, i32) {
    %c0_i32 = arith.constant 0 : i32
    %c0_i32_0 = arith.constant 0 : i32
    return %arg0, %c0_i32 : i32, i32
  }
  func.func @transform_1(%arg0: i32) -> (i32, i32) {
    %c0_i32 = arith.constant 0 : i32
    %c0_i32_0 = arith.constant 0 : i32
    %c0_i32_1 = arith.constant 0 : i32
    return %c0_i32, %c0_i32_0 : i32, i32
  }
  func.func @transform_2(%arg0: i32) -> (i32, i32) {
    %c0_i32 = arith.constant 0 : i32
    %c0_i32_0 = arith.constant 0 : i32
    %c0_i32_1 = arith.constant 0 : i32
    return %c0_i32, %c0_i32_0 : i32, i32
  }
  func.func @transform_3(%arg0: i32) -> (i32, i32) {
    %c0_i32 = arith.constant 0 : i32
    %c0_i32_0 = arith.constant 0 : i32
    return %arg0, %c0_i32 : i32, i32
  }
}

</mosaic_0001>

<llo_original>
// kernel: tpu_custom_call.1
$region0: #{tpu_custom_call.1}
  #allocation0 [shape = 'u32[]', space=smem, size = 0x4, offset = 0x4, fixed_abs, tag = 'smem constant byte address 0x4 - core index']
  #allocation1 [shape = 'u32[144,128]{1,0:T(1,128)}', space=vmem, size = 0x12000, scoped, tag = 'internal scratch']
  %s0 = inlined_call_operand.hbm [shape: bf16[8,64], index: 0, kind: input, shape index: {}]
  %s1 = inlined_call_operand.hbm [shape: bf16[64,768], index: 1, kind: input, shape index: {}]
  %s2 = inlined_call_operand.vmem [shape: f32[1,768], index: 2, kind: input, shape index: {}]
  %s3 = inlined_call_operand.hbm [shape: f32[8,768], index: 3, kind: output, shape index: {}]
  %s4 = sld [smem:[#allocation0]]
  $region30: #{tpu_custom_call.1} parent=0
    _
  %s6 = ssub.s32 1, %s4
  %s7 = scalar_select 0, %s6, %s4
  $region1: #{tpu_custom_call.1} parent=0
    #allocation2 [shape = 'u8[2048]{0}', space=vmem, size = 0x800, scoped, tag = 'input window, operand 0, single buffered']
    #allocation3 [shape = 's32[1]{0}', space=sflag, size = 0x4, scoped, tag = 'scoped memory for tpu_custom_call.1']
    #allocation4 [shape = 's32[1]{0}', space=sflag, size = 0x4, scoped, tag = 'scoped memory for tpu_custom_call.1']
    #allocation5 [shape = 'u8[98304]{0}', space=vmem, size = 0x18000, scoped, tag = 'input window, operand 1, single buffered']
    #allocation6 [shape = 's32[1]{0}', space=sflag, size = 0x4, scoped, tag = 'scoped memory for tpu_custom_call.1']
    #allocation7 [shape = 'u8[24576]{0}', space=vmem, size = 0x6000, scoped, tag = 'output window, operand 0, single buffered']
    %8 = vsyncpa [#allocation3], 0
    %9 = vsyncpa [#allocation6], 0
    %10 = vsyncpa [#allocation4], 0
    // Predicated region
    $region2: #{tpu_custom_call.1} parent=1 // pred_check
      _
    $region3: #{tpu_custom_call.1} parent=1 // pred_check_branch
      %12 = sbr.rel (0) target = $region5
    $region4: #{tpu_custom_call.1} parent=1 // pred_region
      %s14 = ssub.s32 64, 64
      %15 = vsyncadd [#allocation3], %s14
      %s17 = sshll.u32 [#allocation2], 4
      %s18 = int_to_ptr.vmem [resolvable:$true] %s17
      %20 = dma.hbm_to_vmem [thread:$0]  %s0, 64, %s18, [#allocation3]
    $region5: #{tpu_custom_call.1} parent=1 // pred_fallthru
      _
    // Predicated region
    $region6: #{tpu_custom_call.1} parent=1 // pred_check
      _
    $region7: #{tpu_custom_call.1} parent=1 // pred_check_branch
      %22 = sbr.rel (0) target = $region9
    $region8: #{tpu_custom_call.1} parent=1 // pred_region
      %s24 = ssub.s32 3072, 3072
      %25 = vsyncadd [#allocation6], %s24
      %s26 = sshll.u32 [#allocation5], 4
      %s27 = int_to_ptr.vmem [resolvable:$true] %s26
      %32 = dma.hbm_to_vmem [thread:$0]  %s1, 3072, %s27, [#allocation6], 384, 384, 24
    $region9: #{tpu_custom_call.1} parent=1 // pred_fallthru
      _
    // Predicated region
    $region10: #{tpu_custom_call.1} parent=1 // pred_check
      _
    $region11: #{tpu_custom_call.1} parent=1 // pred_check_branch
      %34 = sbr.rel (0) target = $region13
    $region12: #{tpu_custom_call.1} parent=1 // pred_region
      _
    $region13: #{tpu_custom_call.1} parent=1 // pred_fallthru
      _
    // Predicated region
    $region14: #{tpu_custom_call.1} parent=1 // pred_check
      _
    $region15: #{tpu_custom_call.1} parent=1 // pred_check_branch
      %36 = sbr.rel (0) target = $region17
    $region16: #{tpu_custom_call.1} parent=1 // pred_region
      %37 = dma.done [#allocation3], 64
    $region17: #{tpu_custom_call.1} parent=1 // pred_fallthru
      _
    // Predicated region
    $region18: #{tpu_custom_call.1} parent=1 // pred_check
      _
    $region19: #{tpu_custom_call.1} parent=1 // pred_check_branch
      %39 = sbr.rel (0) target = $region21
    $region20: #{tpu_custom_call.1} parent=1 // pred_region
      %40 = dma.done [#allocation6], 3072
    $region21: #{tpu_custom_call.1} parent=1 // pred_fallthru
      _
    %v42 = vld [vmem:[#allocation2] sm:$0xf]
    %v43 = vld [vmem:[#allocation5] sm:$0xff]
    %v44 = vld [vmem:[#allocation5 + $0x8] sm:$0xff]
    %v45 = vld [vmem:[#allocation5 + $0x10] sm:$0xff]
    %v46 = vld [vmem:[#allocation5 + $0x18] sm:$0xff]
    %v47 = vld [vmem:[#allocation5 + $0x20] sm:$0xff]
    %v48 = vld [vmem:[#allocation5 + $0x28] sm:$0xff]
    %v49 = vld [vmem:[#allocation5 + $0x30] sm:$0xff]
    %v50 = vld [vmem:[#allocation5 + $0x38] sm:$0xff]
    %v51 = vld [vmem:[#allocation5 + $0x40] sm:$0xff]
    %v52 = vld [vmem:[#allocation5 + $0x48] sm:$0xff]
    %v53 = vld [vmem:[#allocation5 + $0x50] sm:$0xff]
    %v54 = vld [vmem:[#allocation5 + $0x58] sm:$0xff]
    %v55 = vld [vmem:[#allocation5 + $0x60] sm:$0xff]
    %v56 = vld [vmem:[#allocation5 + $0x68] sm:$0xff]
    %v57 = vld [vmem:[#allocation5 + $0x70] sm:$0xff]
    %v58 = vld [vmem:[#allocation5 + $0x78] sm:$0xff]
    %v59 = vld [vmem:[#allocation5 + $0x80] sm:$0xff]
    %v60 = vld [vmem:[#allocation5 + $0x88] sm:$0xff]
    %v61 = vld [vmem:[#allocation5 + $0x90] sm:$0xff]
    %v62 = vld [vmem:[#allocation5 + $0x98] sm:$0xff]
    %v63 = vld [vmem:[#allocation5 + $0xa0] sm:$0xff]
    %v64 = vld [vmem:[#allocation5 + $0xa8] sm:$0xff]
    %v65 = vld [vmem:[#allocation5 + $0xb0] sm:$0xff]
    %v66 = vld [vmem:[#allocation5 + $0xb8] sm:$0xff]
    %v67 = vld [vmem:[%s2] sm:$0x3f]
    %v69 = vlaneseq
    %v70 = vshrl.u32 %v69, 7
    %v71 = vsub.s32 0, %v70
    %v72 = vrot.slane %v67, %v71
    %v73 = vlaneseq
    %v74 = vshrl.u32 %v73, 7
    %v75 = vsub.s32 1, %v74
    %v76 = vrot.slane %v67, %v75
    %v77 = vlaneseq
    %v78 = vshrl.u32 %v77, 7
    %v79 = vsub.s32 2, %v78
    %v80 = vrot.slane %v67, %v79
    %v81 = vlaneseq
    %v82 = vshrl.u32 %v81, 7
    %v83 = vsub.s32 3, %v82
    %v84 = vrot.slane %v67, %v83
    %v85 = vlaneseq
    %v86 = vshrl.u32 %v85, 7
    %v87 = vsub.s32 4, %v86
    %v88 = vrot.slane %v67, %v87
    %v89 = vlaneseq
    %v90 = vshrl.u32 %v89, 7
    %v91 = vsub.s32 5, %v90
    %v92 = vrot.slane %v67, %v91
    %v123 = vunpack.c.l.b16 %v43
    %v124 = vunpack.c.h.b16 %v43
    %v125 = vunpack.c.l.b16 %v44
    %v126 = vunpack.c.h.b16 %v44
    %v127 = vunpack.c.l.b16 %v45
    %v128 = vunpack.c.h.b16 %v45
    %v129 = vunpack.c.l.b16 %v46
    %v130 = vunpack.c.h.b16 %v46
    %v131 = vunpack.c.l.b16 %v47
    %v132 = vunpack.c.h.b16 %v47
    %v133 = vunpack.c.l.b16 %v48
    %v134 = vunpack.c.h.b16 %v48
    %v135 = vunpack.c.l.b16 %v49
    %v136 = vunpack.c.h.b16 %v49
    %v137 = vunpack.c.l.b16 %v50
    %v138 = vunpack.c.h.b16 %v50
    %v139 = vunpack.c.l.b16 %v51
    %v140 = vunpack.c.h.b16 %v51
    %v141 = vunpack.c.l.b16 %v52
    %v142 = vunpack.c.h.b16 %v52
    %v143 = vunpack.c.l.b16 %v53
    %v144 = vunpack.c.h.b16 %v53
    %v145 = vunpack.c.l.b16 %v54
    %v146 = vunpack.c.h.b16 %v54
    %v147 = vunpack.c.l.b16 %v55
    %v148 = vunpack.c.h.b16 %v55
    %v149 = vunpack.c.l.b16 %v56
    %v150 = vunpack.c.h.b16 %v56
    %v151 = vunpack.c.l.b16 %v57
    %v152 = vunpack.c.h.b16 %v57
    %v153 = vunpack.c.l.b16 %v58
    %v154 = vunpack.c.h.b16 %v58
    %v155 = vunpack.c.l.b16 %v59
    %v156 = vunpack.c.h.b16 %v59
    %v157 = vunpack.c.l.b16 %v60
    %v158 = vunpack.c.h.b16 %v60
    %v159 = vunpack.c.l.b16 %v61
    %v160 = vunpack.c.h.b16 %v61
    %v161 = vunpack.c.l.b16 %v62
    %v162 = vunpack.c.h.b16 %v62
    %v163 = vunpack.c.l.b16 %v63
    %v164 = vunpack.c.h.b16 %v63
    %v165 = vunpack.c.l.b16 %v64
    %v166 = vunpack.c.h.b16 %v64
    %v167 = vunpack.c.l.b16 %v65
    %v168 = vunpack.c.h.b16 %v65
    %v169 = vunpack.c.l.b16 %v66
    %v170 = vunpack.c.h.b16 %v66
    %v171 = vpack.c.b16 %v129, %v123
    %v172 = vpack.c.b16 %v130, %v124
    %v173 = vpack.c.b16 %v131, %v125
    %v174 = vpack.c.b16 %v132, %v126
    %v175 = vpack.c.b16 %v133, %v127
    %v176 = vpack.c.b16 %v134, %v128
    %v177 = vpack.c.b16 %v141, %v135
    %v178 = vpack.c.b16 %v142, %v136
    %v179 = vpack.c.b16 %v143, %v137
    %v180 = vpack.c.b16 %v144, %v138
    %v181 = vpack.c.b16 %v145, %v139
    %v182 = vpack.c.b16 %v146, %v140
    %v183 = vpack.c.b16 %v153, %v147
    %v184 = vpack.c.b16 %v154, %v148
    %v185 = vpack.c.b16 %v155, %v149
    %v186 = vpack.c.b16 %v156, %v150
    %v187 = vpack.c.b16 %v157, %v151
    %v188 = vpack.c.b16 %v158, %v152
    %v189 = vpack.c.b16 %v165, %v159
    %v190 = vpack.c.b16 %v166, %v160
    %v191 = vpack.c.b16 %v167, %v161
    %v192 = vpack.c.b16 %v168, %v162
    %v193 = vpack.c.b16 %v169, %v163
    %v194 = vpack.c.b16 %v170, %v164
    %vm219 = vcmask 523264
    %v221 = vsel %vm219, %v42, 0
    %223 = vmatprep.subr.bf16.mxu0 %v172
    %224 = vmatpush1.bf16.msra.mxu0 %v171
    %225 = vmatprep.subr.bf16.mxu0 %v178
    %226 = vmatpush1.bf16.msra.mxu0 %v177
    %227 = vmatprep.subr.bf16.mxu0 %v184
    %228 = vmatpush1.bf16.msra.mxu0 %v183
    %229 = vmatprep.subr.bf16.mxu0 %v190
    %230 = vmatpush1.bf16.msra.mxu0 %v189
    %231 = vmatprep.subr.bf16.mxu0 0
    %232 = vmatpush1.bf16.msra.mxu0 0
    %233 = vmatprep.subr.bf16.mxu0 0
    %234 = vmatpush1.bf16.msra.mxu0 0
    %235 = vmatprep.subr.bf16.mxu0 0
    %236 = vmatpush1.bf16.msra.mxu0 0
    %237 = vmatprep.subr.bf16.mxu0 0
    %238 = vmatpush1.bf16.msra.mxu0 0
    %239 = vmatprep.subr.bf16.mxu0 0
    %240 = vmatpush1.bf16.msra.mxu0 0
    %241 = vmatprep.subr.bf16.mxu0 0
    %242 = vmatpush1.bf16.msra.mxu0 0
    %243 = vmatprep.subr.bf16.mxu0 0
    %244 = vmatpush1.bf16.msra.mxu0 0
    %245 = vmatprep.subr.bf16.mxu0 0
    %246 = vmatpush1.bf16.msra.mxu0 0
    %247 = vmatprep.subr.bf16.mxu0 0
    %248 = vmatpush1.bf16.msra.mxu0 0
    %249 = vmatprep.subr.bf16.mxu0 0
    %250 = vmatpush1.bf16.msra.mxu0 0
    %251 = vmatprep.subr.bf16.mxu0 0
    %252 = vmatpush1.bf16.msra.mxu0 0
    %253 = vmatprep.subr.bf16.mxu0 0
    %254 = vmatpush1.bf16.msra.mxu0 0
    %255 = vmatprep.mubr.bf16.mxu0 0
    %256 = vmatmul.mubr.bf16.gmra.mrb[0].mxu0 %v221
    %v257 = vpop.f32.mrb[0].mxu0
    %v258 = vadd.f32 %v72, %v257
    %v259 = vpop.f32.mrb[0].mxu0
    %v260 = vadd.f32 %v76, %v259
    %v261 = vpop.f32.mrb[0].mxu0
    %v262 = vpop.f32.mrb[0].mxu0
    %263 = vdwg.mxu0
    %264 = vmatprep.subr.bf16.mxu0 %v174
    %265 = vmatpush1.bf16.msra.mxu0 %v173
    %266 = vmatprep.subr.bf16.mxu0 %v180
    %267 = vmatpush1.bf16.msra.mxu0 %v179
    %268 = vmatprep.subr.bf16.mxu0 %v186
    %269 = vmatpush1.bf16.msra.mxu0 %v185
    %270 = vmatprep.subr.bf16.mxu0 %v192
    %271 = vmatpush1.bf16.msra.mxu0 %v191
    %272 = vmatprep.subr.bf16.mxu0 0
    %273 = vmatpush1.bf16.msra.mxu0 0
    %274 = vmatprep.subr.bf16.mxu0 0
    %275 = vmatpush1.bf16.msra.mxu0 0
    %276 = vmatprep.subr.bf16.mxu0 0
    %277 = vmatpush1.bf16.msra.mxu0 0
    %278 = vmatprep.subr.bf16.mxu0 0
    %279 = vmatpush1.bf16.msra.mxu0 0
    %280 = vmatprep.subr.bf16.mxu0 0
    %281 = vmatpush1.bf16.msra.mxu0 0
    %282 = vmatprep.subr.bf16.mxu0 0
    %283 = vmatpush1.bf16.msra.mxu0 0
    %284 = vmatprep.subr.bf16.mxu0 0
    %285 = vmatpush1.bf16.msra.mxu0 0
    %286 = vmatprep.subr.bf16.mxu0 0
    %287 = vmatpush1.bf16.msra.mxu0 0
    %288 = vmatprep.subr.bf16.mxu0 0
    %289 = vmatpush1.bf16.msra.mxu0 0
    %290 = vmatprep.subr.bf16.mxu0 0
    %291 = vmatpush1.bf16.msra.mxu0 0
    %292 = vmatprep.subr.bf16.mxu0 0
    %293 = vmatpush1.bf16.msra.mxu0 0
    %294 = vmatprep.subr.bf16.mxu0 0
    %295 = vmatpush1.bf16.msra.mxu0 0
    %296 = vmatprep.mubr.bf16.mxu0 0
    %297 = vmatmul.mubr.bf16.gmra.mrb[0].mxu0 %v221
    %v298 = vpop.f32.mrb[0].mxu0
    %v299 = vadd.f32 %v80, %v298
    %v300 = vpop.f32.mrb[0].mxu0
    %v301 = vadd.f32 %v84, %v300
    %v302 = vpop.f32.mrb[0].mxu0
    %v303 = vpop.f32.mrb[0].mxu0
    %304 = vdwg.mxu0
    %305 = vmatprep.subr.bf16.mxu0 %v176
    %306 = vmatpush1.bf16.msra.mxu0 %v175
    %307 = vmatprep.subr.bf16.mxu0 %v182
    %308 = vmatpush1.bf16.msra.mxu0 %v181
    %309 = vmatprep.subr.bf16.mxu0 %v188
    %310 = vmatpush1.bf16.msra.mxu0 %v187
    %311 = vmatprep.subr.bf16.mxu0 %v194
    %312 = vmatpush1.bf16.msra.mxu0 %v193
    %313 = vmatprep.subr.bf16.mxu0 0
    %314 = vmatpush1.bf16.msra.mxu0 0
    %315 = vmatprep.subr.bf16.mxu0 0
    %316 = vmatpush1.bf16.msra.mxu0 0
    %317 = vmatprep.subr.bf16.mxu0 0
    %318 = vmatpush1.bf16.msra.mxu0 0
    %319 = vmatprep.subr.bf16.mxu0 0
    %320 = vmatpush1.bf16.msra.mxu0 0
    %321 = vmatprep.subr.bf16.mxu0 0
    %322 = vmatpush1.bf16.msra.mxu0 0
    %323 = vmatprep.subr.bf16.mxu0 0
    %324 = vmatpush1.bf16.msra.mxu0 0
    %325 = vmatprep.subr.bf16.mxu0 0
    %326 = vmatpush1.bf16.msra.mxu0 0
    %327 = vmatprep.subr.bf16.mxu0 0
    %328 = vmatpush1.bf16.msra.mxu0 0
    %329 = vmatprep.subr.bf16.mxu0 0
    %330 = vmatpush1.bf16.msra.mxu0 0
    %331 = vmatprep.subr.bf16.mxu0 0
    %332 = vmatpush1.bf16.msra.mxu0 0
    %333 = vmatprep.subr.bf16.mxu0 0
    %334 = vmatpush1.bf16.msra.mxu0 0
    %335 = vmatprep.subr.bf16.mxu0 0
    %336 = vmatpush1.bf16.msra.mxu0 0
    %337 = vmatprep.mubr.bf16.mxu0 0
    %338 = vmatmul.mubr.bf16.gmra.mrb[0].mxu0 %v221
    %v339 = vpop.f32.mrb[0].mxu0
    %v340 = vadd.f32 %v88, %v339
    %v341 = vpop.f32.mrb[0].mxu0
    %v342 = vadd.f32 %v92, %v341
    %v343 = vpop.f32.mrb[0].mxu0
    %v344 = vpop.f32.mrb[0].mxu0
    %345 = vdwg.mxu0
    %v346 = vsub.f32 0.0, %v258
    %v347 = vsub.f32 0.0, %v260
    %v348 = vsub.f32 0.0, %v299
    %v349 = vsub.f32 0.0, %v301
    %v350 = vmul.f32 %v346, 1.442695
    %v351 = vpow.pop %v350
    %v352 = vmul.f32 %v347, 1.442695
    %v353 = vpow.pop %v352
    %v354 = vmul.f32 %v348, 1.442695
    %v355 = vpow.pop %v354
    %v356 = vmul.f32 %v349, 1.442695
    %v357 = vpow.pop %v356
    %v358 = vadd.f32 %v351, 1.0
    %v359 = vadd.f32 %v353, 1.0
    %v360 = vadd.f32 %v355, 1.0
    %v361 = vadd.f32 %v357, 1.0
    %v362 = vrcp.pop %v358
    %v363 = vrcp.pop %v359
    %v364 = vrcp.pop %v360
    %v365 = vrcp.pop %v361
    %366 = vst [vmem:[#allocation7] sm:$0xff] %v362
    %367 = vst [vmem:[#allocation7 + $0x8] sm:$0xff] %v363
    %368 = vst [vmem:[#allocation7 + $0x10] sm:$0xff] %v364
    %369 = vst [vmem:[#allocation7 + $0x18] sm:$0xff] %v365
    %v370 = vmax.f32 %v340, 0.0
    %v371 = vmax.f32 %v342, 0.0
    %372 = vst [vmem:[#allocation7 + $0x20] sm:$0xff] %v370
    %373 = vst [vmem:[#allocation7 + $0x28] sm:$0xff] %v371
    // Predicated region
    $region22: #{tpu_custom_call.1} parent=1 // pred_check
      _
    $region23: #{tpu_custom_call.1} parent=1 // pred_check_branch
      %375 = sbr.rel (0) target = $region25
    $region24: #{tpu_custom_call.1} parent=1 // pred_region
      %s377 = ssub.s32 768, 768
      %378 = vsyncadd [#allocation4], %s377
      %s380 = sshll.u32 [#allocation7], 4
      %s381 = int_to_ptr.vmem [resolvable:$true] %s380
      %383 = dma.vmem_to_hbm [thread:$0]  %s381, 768, %s3, [#allocation4]
    $region25: #{tpu_custom_call.1} parent=1 // pred_fallthru
      _
    // Predicated region
    $region26: #{tpu_custom_call.1} parent=1 // pred_check
      _
    $region27: #{tpu_custom_call.1} parent=1 // pred_check_branch
      %385 = sbr.rel (0) target = $region29
    $region28: #{tpu_custom_call.1} parent=1 // pred_region
      %386 = dma.done [#allocation4], 768
    $region29: #{tpu_custom_call.1} parent=1 // pred_fallthru
      _
    %387 = vsyncpa [#allocation3], 1
    %388 = vsyncpa [#allocation6], 1
    %389 = vsyncpa [#allocation4], 1

// kernel: tpu_custom_call.1
$region0: #{tpu_custom_call.1}
  #allocation0 [shape = 'u32[]', space=smem, size = 0x4, offset = 0x4, fixed_abs, tag = 'smem constant byte address 0x4 - core index']
  #allocation1 [shape = 'u32[144,128]{1,0:T(1,128)}', space=vmem, size = 0x12000, scoped, tag = 'internal scratch']
  %s0 = inlined_call_operand.hbm [shape: bf16[8,64], index: 0, kind: input, shape index: {}]
  %s1 = inlined_call_operand.hbm [shape: bf16[64,768], index: 1, kind: input, shape index: {}]
  %s2 = inlined_call_operand.vmem [shape: f32[1,768], index: 2, kind: input, shape index: {}]
  %s3 = inlined_call_operand.hbm [shape: f32[8,768], index: 3, kind: output, shape index: {}]
  %s4 = sld [smem:[#allocation0]]
  $region30: #{tpu_custom_call.1} parent=0
    _
  %s6 = ssub.s32 1, %s4
  %s7 = scalar_select 0, %s6, %s4
  $region1: #{tpu_custom_call.1} parent=0
    #allocation2 [shape = 'u8[2048]{0}', space=vmem, size = 0x800, scoped, tag = 'input window, operand 0, single buffered']
    #allocation3 [shape = 's32[1]{0}', space=sflag, size = 0x4, scoped, tag = 'scoped memory for tpu_custom_call.1']
    #allocation4 [shape = 's32[1]{0}', space=sflag, size = 0x4, scoped, tag = 'scoped memory for tpu_custom_call.1']
    #allocation5 [shape = 'u8[98304]{0}', space=vmem, size = 0x18000, scoped, tag = 'input window, operand 1, single buffered']
    #allocation6 [shape = 's32[1]{0}', space=sflag, size = 0x4, scoped, tag = 'scoped memory for tpu_custom_call.1']
    #allocation7 [shape = 'u8[24576]{0}', space=vmem, size = 0x6000, scoped, tag = 'output window, operand 0, single buffered']
    %8 = vsyncpa [#allocation3], 0
    %9 = vsyncpa [#allocation6], 0
    %10 = vsyncpa [#allocation4], 0
    // Predicated region
    $region2: #{tpu_custom_call.1} parent=1 // pred_check
      _
    $region3: #{tpu_custom_call.1} parent=1 // pred_check_branch
      %12 = sbr.rel (0) target = $region5
    $region4: #{tpu_custom_call.1} parent=1 // pred_region
      %s14 = ssub.s32 64, 64
      %15 = vsyncadd [#allocation3], %s14
      %s17 = sshll.u32 [#allocation2], 4
      %s18 = int_to_ptr.vmem [resolvable:$true] %s17
      %20 = dma.hbm_to_vmem [thread:$0]  %s0, 64, %s18, [#allocation3]
    $region5: #{tpu_custom_call.1} parent=1 // pred_fallthru
      _
    // Predicated region
    $region6: #{tpu_custom_call.1} parent=1 // pred_check
      _
    $region7: #{tpu_custom_call.1} parent=1 // pred_check_branch
      %22 = sbr.rel (0) target = $region9
    $region8: #{tpu_custom_call.1} parent=1 // pred_region
      %s24 = ssub.s32 3072, 3072
      %25 = vsyncadd [#allocation6], %s24
      %s26 = sshll.u32 [#allocation5], 4
      %s27 = int_to_ptr.vmem [resolvable:$true] %s26
      %32 = dma.hbm_to_vmem [thread:$0]  %s1, 3072, %s27, [#allocation6], 384, 384, 24
    $region9: #{tpu_custom_call.1} parent=1 // pred_fallthru
      _
    // Predicated region
    $region10: #{tpu_custom_call.1} parent=1 // pred_check
      _
    $region11: #{tpu_custom_call.1} parent=1 // pred_check_branch
      %34 = sbr.rel (0) target = $region13
    $region12: #{tpu_custom_call.1} parent=1 // pred_region
      _
    $region13: #{tpu_custom_call.1} parent=1 // pred_fallthru
      _
    // Predicated region
    $region14: #{tpu_custom_call.1} parent=1 // pred_check
      _
    $region15: #{tpu_custom_call.1} parent=1 // pred_check_branch
      %36 = sbr.rel (0) target = $region17
    $region16: #{tpu_custom_call.1} parent=1 // pred_region
      %37 = dma.done [#allocation3], 64
    $region17: #{tpu_custom_call.1} parent=1 // pred_fallthru
      _
    // Predicated region
    $region18: #{tpu_custom_call.1} parent=1 // pred_check
      _
    $region19: #{tpu_custom_call.1} parent=1 // pred_check_branch
      %39 = sbr.rel (0) target = $region21
    $region20: #{tpu_custom_call.1} parent=1 // pred_region
      %40 = dma.done [#allocation6], 3072
    $region21: #{tpu_custom_call.1} parent=1 // pred_fallthru
      _
    %v42 = vld [vmem:[#allocation2] sm:$0xf]
    %v43 = vld [vmem:[#allocation5] sm:$0xff]
    %v44 = vld [vmem:[#allocation5 + $0x8] sm:$0xff]
    %v45 = vld [vmem:[#allocation5 + $0x10] sm:$0xff]
    %v46 = vld [vmem:[#allocation5 + $0x18] sm:$0xff]
    %v47 = vld [vmem:[#allocation5 + $0x20] sm:$0xff]
    %v48 = vld [vmem:[#allocation5 + $0x28] sm:$0xff]
    %v49 = vld [vmem:[#allocation5 + $0x30] sm:$0xff]
    %v50 = vld [vmem:[#allocation5 + $0x38] sm:$0xff]
    %v51 = vld [vmem:[#allocation5 + $0x40] sm:$0xff]
    %v52 = vld [vmem:[#allocation5 + $0x48] sm:$0xff]
    %v53 = vld [vmem:[#allocation5 + $0x50] sm:$0xff]
    %v54 = vld [vmem:[#allocation5 + $0x58] sm:$0xff]
    %v55 = vld [vmem:[#allocation5 + $0x60] sm:$0xff]
    %v56 = vld [vmem:[#allocation5 + $0x68] sm:$0xff]
    %v57 = vld [vmem:[#allocation5 + $0x70] sm:$0xff]
    %v58 = vld [vmem:[#allocation5 + $0x78] sm:$0xff]
    %v59 = vld [vmem:[#allocation5 + $0x80] sm:$0xff]
    %v60 = vld [vmem:[#allocation5 + $0x88] sm:$0xff]
    %v61 = vld [vmem:[#allocation5 + $0x90] sm:$0xff]
    %v62 = vld [vmem:[#allocation5 + $0x98] sm:$0xff]
    %v63 = vld [vmem:[#allocation5 + $0xa0] sm:$0xff]
    %v64 = vld [vmem:[#allocation5 + $0xa8] sm:$0xff]
    %v65 = vld [vmem:[#allocation5 + $0xb0] sm:$0xff]
    %v66 = vld [vmem:[#allocation5 + $0xb8] sm:$0xff]
    %v67 = vld [vmem:[%s2] sm:$0x3f]
    %v69 = vlaneseq
    %v70 = vshrl.u32 %v69, 7
    %v71 = vsub.s32 0, %v70
    %v72 = vrot.slane %v67, %v71
    %v73 = vlaneseq
    %v74 = vshrl.u32 %v73, 7
    %v75 = vsub.s32 1, %v74
    %v76 = vrot.slane %v67, %v75
    %v77 = vlaneseq
    %v78 = vshrl.u32 %v77, 7
    %v79 = vsub.s32 2, %v78
    %v80 = vrot.slane %v67, %v79
    %v81 = vlaneseq
    %v82 = vshrl.u32 %v81, 7
    %v83 = vsub.s32 3, %v82
    %v84 = vrot.slane %v67, %v83
    %v85 = vlaneseq
    %v86 = vshrl.u32 %v85, 7
    %v87 = vsub.s32 4, %v86
    %v88 = vrot.slane %v67, %v87
    %v89 = vlaneseq
    %v90 = vshrl.u32 %v89, 7
    %v91 = vsub.s32 5, %v90
    %v92 = vrot.slane %v67, %v91
    %v123 = vunpack.c.l.b16 %v43
    %v124 = vunpack.c.h.b16 %v43
    %v125 = vunpack.c.l.b16 %v44
    %v126 = vunpack.c.h.b16 %v44
    %v127 = vunpack.c.l.b16 %v45
    %v128 = vunpack.c.h.b16 %v45
    %v129 = vunpack.c.l.b16 %v46
    %v130 = vunpack.c.h.b16 %v46
    %v131 = vunpack.c.l.b16 %v47
    %v132 = vunpack.c.h.b16 %v47
    %v133 = vunpack.c.l.b16 %v48
    %v134 = vunpack.c.h.b16 %v48
    %v135 = vunpack.c.l.b16 %v49
    %v136 = vunpack.c.h.b16 %v49
    %v137 = vunpack.c.l.b16 %v50
    %v138 = vunpack.c.h.b16 %v50
    %v139 = vunpack.c.l.b16 %v51
    %v140 = vunpack.c.h.b16 %v51
    %v141 = vunpack.c.l.b16 %v52
    %v142 = vunpack.c.h.b16 %v52
    %v143 = vunpack.c.l.b16 %v53
    %v144 = vunpack.c.h.b16 %v53
    %v145 = vunpack.c.l.b16 %v54
    %v146 = vunpack.c.h.b16 %v54
    %v147 = vunpack.c.l.b16 %v55
    %v148 = vunpack.c.h.b16 %v55
    %v149 = vunpack.c.l.b16 %v56
    %v150 = vunpack.c.h.b16 %v56
    %v151 = vunpack.c.l.b16 %v57
    %v152 = vunpack.c.h.b16 %v57
    %v153 = vunpack.c.l.b16 %v58
    %v154 = vunpack.c.h.b16 %v58
    %v155 = vunpack.c.l.b16 %v59
    %v156 = vunpack.c.h.b16 %v59
    %v157 = vunpack.c.l.b16 %v60
    %v158 = vunpack.c.h.b16 %v60
    %v159 = vunpack.c.l.b16 %v61
    %v160 = vunpack.c.h.b16 %v61
    %v161 = vunpack.c.l.b16 %v62
    %v162 = vunpack.c.h.b16 %v62
    %v163 = vunpack.c.l.b16 %v63
    %v164 = vunpack.c.h.b16 %v63
    %v165 = vunpack.c.l.b16 %v64
    %v166 = vunpack.c.h.b16 %v64
    %v167 = vunpack.c.l.b16 %v65
    %v168 = vunpack.c.h.b16 %v65
    %v169 = vunpack.c.l.b16 %v66
    %v170 = vunpack.c.h.b16 %v66
    %v171 = vpack.c.b16 %v129, %v123
    %v172 = vpack.c.b16 %v130, %v124
    %v173 = vpack.c.b16 %v131, %v125
    %v174 = vpack.c.b16 %v132, %v126
    %v175 = vpack.c.b16 %v133, %v127
    %v176 = vpack.c.b16 %v134, %v128
    %v177 = vpack.c.b16 %v141, %v135
    %v178 = vpack.c.b16 %v142, %v136
    %v179 = vpack.c.b16 %v143, %v137
    %v180 = vpack.c.b16 %v144, %v138
    %v181 = vpack.c.b16 %v145, %v139
    %v182 = vpack.c.b16 %v146, %v140
    %v183 = vpack.c.b16 %v153, %v147
    %v184 = vpack.c.b16 %v154, %v148
    %v185 = vpack.c.b16 %v155, %v149
    %v186 = vpack.c.b16 %v156, %v150
    %v187 = vpack.c.b16 %v157, %v151
    %v188 = vpack.c.b16 %v158, %v152
    %v189 = vpack.c.b16 %v165, %v159
    %v190 = vpack.c.b16 %v166, %v160
    %v191 = vpack.c.b16 %v167, %v161
    %v192 = vpack.c.b16 %v168, %v162
    %v193 = vpack.c.b16 %v169, %v163
    %v194 = vpack.c.b16 %v170, %v164
    %vm219 = vcmask 523264
    %v221 = vsel %vm219, %v42, 0
    %223 = vmatprep.subr.bf16.mxu0 %v172
    %224 = vmatpush1.bf16.msra.mxu0 %v171
    %225 = vmatprep.subr.bf16.mxu0 %v178
    %226 = vmatpush1.bf16.msra.mxu0 %v177
    %227 = vmatprep.subr.bf16.mxu0 %v184
    %228 = vmatpush1.bf16.msra.mxu0 %v183
    %229 = vmatprep.subr.bf16.mxu0 %v190
    %230 = vmatpush1.bf16.msra.mxu0 %v189
    %231 = vmatprep.subr.bf16.mxu0 0
    %232 = vmatpush1.bf16.msra.mxu0 0
    %233 = vmatprep.subr.bf16.mxu0 0
    %234 = vmatpush1.bf16.msra.mxu0 0
    %235 = vmatprep.subr.bf16.mxu0 0
    %236 = vmatpush1.bf16.msra.mxu0 0
    %237 = vmatprep.subr.bf16.mxu0 0
    %238 = vmatpush1.bf16.msra.mxu0 0
    %239 = vmatprep.subr.bf16.mxu0 0
    %240 = vmatpush1.bf16.msra.mxu0 0
    %241 = vmatprep.subr.bf16.mxu0 0
    %242 = vmatpush1.bf16.msra.mxu0 0
    %243 = vmatprep.subr.bf16.mxu0 0
    %244 = vmatpush1.bf16.msra.mxu0 0
    %245 = vmatprep.subr.bf16.mxu0 0
    %246 = vmatpush1.bf16.msra.mxu0 0
    %247 = vmatprep.subr.bf16.mxu0 0
    %248 = vmatpush1.bf16.msra.mxu0 0
    %249 = vmatprep.subr.bf16.mxu0 0
    %250 = vmatpush1.bf16.msra.mxu0 0
    %251 = vmatprep.subr.bf16.mxu0 0
    %252 = vmatpush1.bf16.msra.mxu0 0
    %253 = vmatprep.subr.bf16.mxu0 0
    %254 = vmatpush1.bf16.msra.mxu0 0
    %255 = vmatprep.mubr.bf16.mxu0 0
    %256 = vmatmul.mubr.bf16.gmra.mrb[0].mxu0 %v221
    %v257 = vpop.f32.mrb[0].mxu0
    %v258 = vadd.f32 %v72, %v257
    %v259 = vpop.f32.mrb[0].mxu0
    %v260 = vadd.f32 %v76, %v259
    %v261 = vpop.f32.mrb[0].mxu0
    %v262 = vpop.f32.mrb[0].mxu0
    %263 = vdwg.mxu0
    %264 = vmatprep.subr.bf16.mxu0 %v174
    %265 = vmatpush1.bf16.msra.mxu0 %v173
    %266 = vmatprep.subr.bf16.mxu0 %v180
    %267 = vmatpush1.bf16.msra.mxu0 %v179
    %268 = vmatprep.subr.bf16.mxu0 %v186
    %269 = vmatpush1.bf16.msra.mxu0 %v185
    %270 = vmatprep.subr.bf16.mxu0 %v192
    %271 = vmatpush1.bf16.msra.mxu0 %v191
    %272 = vmatprep.subr.bf16.mxu0 0
    %273 = vmatpush1.bf16.msra.mxu0 0
    %274 = vmatprep.subr.bf16.mxu0 0
    %275 = vmatpush1.bf16.msra.mxu0 0
    %276 = vmatprep.subr.bf16.mxu0 0
    %277 = vmatpush1.bf16.msra.mxu0 0
    %278 = vmatprep.subr.bf16.mxu0 0
    %279 = vmatpush1.bf16.msra.mxu0 0
    %280 = vmatprep.subr.bf16.mxu0 0
    %281 = vmatpush1.bf16.msra.mxu0 0
    %282 = vmatprep.subr.bf16.mxu0 0
    %283 = vmatpush1.bf16.msra.mxu0 0
    %284 = vmatprep.subr.bf16.mxu0 0
    %285 = vmatpush1.bf16.msra.mxu0 0
    %286 = vmatprep.subr.bf16.mxu0 0
    %287 = vmatpush1.bf16.msra.mxu0 0
    %288 = vmatprep.subr.bf16.mxu0 0
    %289 = vmatpush1.bf16.msra.mxu0 0
    %290 = vmatprep.subr.bf16.mxu0 0
    %291 = vmatpush1.bf16.msra.mxu0 0
    %292 = vmatprep.subr.bf16.mxu0 0
    %293 = vmatpush1.bf16.msra.mxu0 0
    %294 = vmatprep.subr.bf16.mxu0 0
    %295 = vmatpush1.bf16.msra.mxu0 0
    %296 = vmatprep.mubr.bf16.mxu0 0
    %297 = vmatmul.mubr.bf16.gmra.mrb[0].mxu0 %v221
    %v298 = vpop.f32.mrb[0].mxu0
    %v299 = vadd.f32 %v80, %v298
    %v300 = vpop.f32.mrb[0].mxu0
    %v301 = vadd.f32 %v84, %v300
    %v302 = vpop.f32.mrb[0].mxu0
    %v303 = vpop.f32.mrb[0].mxu0
    %304 = vdwg.mxu0
    %305 = vmatprep.subr.bf16.mxu0 %v176
    %306 = vmatpush1.bf16.msra.mxu0 %v175
    %307 = vmatprep.subr.bf16.mxu0 %v182
    %308 = vmatpush1.bf16.msra.mxu0 %v181
    %309 = vmatprep.subr.bf16.mxu0 %v188
    %310 = vmatpush1.bf16.msra.mxu0 %v187
    %311 = vmatprep.subr.bf16.mxu0 %v194
    %312 = vmatpush1.bf16.msra.mxu0 %v193
    %313 = vmatprep.subr.bf16.mxu0 0
    %314 = vmatpush1.bf16.msra.mxu0 0
    %315 = vmatprep.subr.bf16.mxu0 0
    %316 = vmatpush1.bf16.msra.mxu0 0
    %317 = vmatprep.subr.bf16.mxu0 0
    %318 = vmatpush1.bf16.msra.mxu0 0
    %319 = vmatprep.subr.bf16.mxu0 0
    %320 = vmatpush1.bf16.msra.mxu0 0
    %321 = vmatprep.subr.bf16.mxu0 0
    %322 = vmatpush1.bf16.msra.mxu0 0
    %323 = vmatprep.subr.bf16.mxu0 0
    %324 = vmatpush1.bf16.msra.mxu0 0
    %325 = vmatprep.subr.bf16.mxu0 0
    %326 = vmatpush1.bf16.msra.mxu0 0
    %327 = vmatprep.subr.bf16.mxu0 0
    %328 = vmatpush1.bf16.msra.mxu0 0
    %329 = vmatprep.subr.bf16.mxu0 0
    %330 = vmatpush1.bf16.msra.mxu0 0
    %331 = vmatprep.subr.bf16.mxu0 0
    %332 = vmatpush1.bf16.msra.mxu0 0
    %333 = vmatprep.subr.bf16.mxu0 0
    %334 = vmatpush1.bf16.msra.mxu0 0
    %335 = vmatprep.subr.bf16.mxu0 0
    %336 = vmatpush1.bf16.msra.mxu0 0
    %337 = vmatprep.mubr.bf16.mxu0 0
    %338 = vmatmul.mubr.bf16.gmra.mrb[0].mxu0 %v221
    %v339 = vpop.f32.mrb[0].mxu0
    %v340 = vadd.f32 %v88, %v339
    %v341 = vpop.f32.mrb[0].mxu0
    %v342 = vadd.f32 %v92, %v341
    %v343 = vpop.f32.mrb[0].mxu0
    %v344 = vpop.f32.mrb[0].mxu0
    %345 = vdwg.mxu0
    %v346 = vsub.f32 0.0, %v258
    %v347 = vsub.f32 0.0, %v260
    %v348 = vsub.f32 0.0, %v299
    %v349 = vsub.f32 0.0, %v301
    %v350 = vmul.f32 %v346, 1.442695
    %v351 = vpow.pop %v350
    %v352 = vmul.f32 %v347, 1.442695
    %v353 = vpow.pop %v352
    %v354 = vmul.f32 %v348, 1.442695
    %v355 = vpow.pop %v354
    %v356 = vmul.f32 %v349, 1.442695
    %v357 = vpow.pop %v356
    %v358 = vadd.f32 %v351, 1.0
    %v359 = vadd.f32 %v353, 1.0
    %v360 = vadd.f32 %v355, 1.0
    %v361 = vadd.f32 %v357, 1.0
    %v362 = vrcp.pop %v358
    %v363 = vrcp.pop %v359
    %v364 = vrcp.pop %v360
    %v365 = vrcp.pop %v361
    %366 = vst [vmem:[#allocation7] sm:$0xff] %v362
    %367 = vst [vmem:[#allocation7 + $0x8] sm:$0xff] %v363
    %368 = vst [vmem:[#allocation7 + $0x10] sm:$0xff] %v364
    %369 = vst [vmem:[#allocation7 + $0x18] sm:$0xff] %v365
    %v370 = vmax.f32 %v340, 0.0
    %v371 = vmax.f32 %v342, 0.0
    %372 = vst [vmem:[#allocation7 + $0x20] sm:$0xff] %v370
    %373 = vst [vmem:[#allocation7 + $0x28] sm:$0xff] %v371
    // Predicated region
    $region22: #{tpu_custom_call.1} parent=1 // pred_check
      _
    $region23: #{tpu_custom_call.1} parent=1 // pred_check_branch
      %375 = sbr.rel (0) target = $region25
    $region24: #{tpu_custom_call.1} parent=1 // pred_region
      %s377 = ssub.s32 768, 768
      %378 = vsyncadd [#allocation4], %s377
      %s380 = sshll.u32 [#allocation7], 4
      %s381 = int_to_ptr.vmem [resolvable:$true] %s380
      %383 = dma.vmem_to_hbm [thread:$0]  %s381, 768, %s3, [#allocation4]
    $region25: #{tpu_custom_call.1} parent=1 // pred_fallthru
      _
    // Predicated region
    $region26: #{tpu_custom_call.1} parent=1 // pred_check
      _
    $region27: #{tpu_custom_call.1} parent=1 // pred_check_branch
      %385 = sbr.rel (0) target = $region29
    $region28: #{tpu_custom_call.1} parent=1 // pred_region
      %386 = dma.done [#allocation4], 768
    $region29: #{tpu_custom_call.1} parent=1 // pred_fallthru
      _
    %387 = vsyncpa [#allocation3], 1
    %388 = vsyncpa [#allocation6], 1
    %389 = vsyncpa [#allocation4], 1

</llo_original>
